<compile_context>
chip_gen: v7x
topology: tpu7x:2x2x1
jax: 0.10.0
libtpu: 0.0.40
codegen_flags: <defaults>
</compile_context>

<pallas_src>
import functools

import jax
import jax.numpy as jnp
from jax import lax
from jax.experimental import pallas as pl
from jax.experimental.pallas import tpu as pltpu

LANES = 128


def _round_up(x: int, m: int) -> int:
    return ((x + m - 1) // m) * m


# ---------------- Fused single-shot kernel (array fits in VMEM) ----------------
def _fused_kernel(x_ref, o_ref):
    x = x_ref[...].astype(jnp.float32)
    m = jnp.max(x)
    d = x / m
    d = d * d
    d = d * 255.0
    o_ref[...] = jnp.round(d).astype(o_ref.dtype)


# ---------------- Pass 1: partial max reduction ----------------
def _max_kernel(x_ref, pmax_ref, *, bm, steps, valid_rows, ragged):
    """Accumulate an (8, 128) running max per grid split."""
    i = pl.program_id(1)

    @pl.when(i == 0)
    def _():
        pmax_ref[...] = jnp.full(pmax_ref.shape, -jnp.inf, dtype=pmax_ref.dtype)

    x = x_ref[...].astype(jnp.float32)                               # (bm, 128)
    if ragged:
        # Boundary block: rows beyond the real array are unspecified -> mask.
        s = pl.program_id(0)
        row0 = (s * steps + i) * bm
        row_ids = row0 + lax.broadcasted_iota(jnp.int32, (bm, LANES), 0)
        x = jnp.where(row_ids < valid_rows, x, -jnp.inf)
    # Fold bm rows down to 8 sublanes with elementwise (VPU) maxima only.
    folded = jnp.max(x.reshape(bm // 8, 8, LANES), axis=0)           # (8, 128)
    pmax_ref[0] = jnp.maximum(pmax_ref[0], folded)


# ---------------- Pass 2: elementwise transform ----------------
def _elementwise_kernel(m_ref, x_ref, o_ref):
    """o = round((x / m)^2 * 255); m is a (1,) f32 scalar in SMEM."""
    m = m_ref[0]
    x = x_ref[...].astype(jnp.float32)
    d = x / m
    d = d * d
    d = d * 255.0
    o_ref[...] = jnp.round(d).astype(o_ref.dtype)


@functools.partial(jax.jit, static_argnames=("block_rows", "fused_rows_limit"))
def feature_sg(data: jax.Array, *, block_rows: int = 2048,
               fused_rows_limit: int = 4096) -> jax.Array:
    """JAX/Pallas equivalent of Feature_Sg.forward."""
    orig_shape = data.shape
    x = data if jnp.issubdtype(data.dtype, jnp.floating) else data.astype(jnp.float32)
    out_dtype = x.dtype

    x_flat = x.reshape(-1)
    total = x_flat.shape[0]
    rows = pl.cdiv(total, LANES)
    lane_total = rows * LANES

    # Lane-alignment pad only (<=127 elems); fill never exceeds the true max.
    if lane_total != total:
        fill = jnp.finfo(x_flat.dtype).min
        x_flat = jnp.pad(x_flat, (0, lane_total - total), constant_values=fill)
    x2d = x_flat.reshape(rows, LANES)

    if rows <= fused_rows_limit:
        # ---- Small array: single fused kernel, whole slab resident in VMEM ----
        out2d = pl.pallas_call(
            _fused_kernel,
            out_shape=jax.ShapeDtypeStruct((rows, LANES), out_dtype),
        )(x2d)
    else:
        # ---- Large array: two streaming passes ----
        bm = min(_round_up(block_rows, 8), _round_up(rows, 8))
        n_blocks = pl.cdiv(rows, bm)
        num_splits = 2 if (n_blocks >= 2 and n_blocks % 2 == 0) else 1
        steps = n_blocks // num_splits
        ragged = (rows % bm) != 0

        # Pass 1: partial max -> (num_splits, 8, 128) f32
        pmax = pl.pallas_call(
            functools.partial(_max_kernel, bm=bm, steps=steps,
                              valid_rows=rows, ragged=ragged),
            out_shape=jax.ShapeDtypeStruct((num_splits, 8, LANES), jnp.float32),
            grid_spec=pltpu.PrefetchScalarGridSpec(
                num_scalar_prefetch=0,
                grid=(num_splits, steps),
                in_specs=[pl.BlockSpec((bm, LANES),
                                       lambda s, i: (s * steps + i, 0))],
                out_specs=pl.BlockSpec((1, 8, LANES), lambda s, i: (s, 0, 0)),
            ),
            compiler_params=pltpu.CompilerParams(
                dimension_semantics=("parallel", "arbitrary")),
        )(x2d)

        # Tiny cross-lane/sublane reduce + scalar prep outside the kernel.
        m_scalar = jnp.max(pmax).astype(jnp.float32).reshape(1)   # (1,) -> SMEM

        # Pass 2: elementwise, tiles streamed at the HBM roofline.
        out2d = pl.pallas_call(
            _elementwise_kernel,
            out_shape=jax.ShapeDtypeStruct((rows, LANES), out_dtype),
            grid_spec=pltpu.PrefetchScalarGridSpec(
                num_scalar_prefetch=0,
                grid=(n_blocks,),
                in_specs=[
                    pl.BlockSpec(memory_space=pltpu.MemorySpace.SMEM),  # max
                    pl.BlockSpec((bm, LANES), lambda i: (i, 0)),        # data
                ],
                out_specs=pl.BlockSpec((bm, LANES), lambda i: (i, 0)),
            ),
            compiler_params=pltpu.CompilerParams(
                dimension_semantics=("parallel",)),
        )(m_scalar, x2d)

    out_flat = out2d.reshape(-1)
    if lane_total != total:
        out_flat = out_flat[:total]
    return out_flat.reshape(orig_shape)


if __name__ == "__main__":
    key = jax.random.PRNGKey(0)
    k1, k2, k3, k4 = jax.random.split(key, 4)

    def ref_fn(x):  # plain-JAX reference, same op order as the PyTorch module
        m = jnp.max(x)
        return jnp.round(jnp.square(x / m) * 255.0)

    # 1) Small 4-D input -> fused single-kernel path.
    x1 = jax.random.uniform(k1, (2, 4, 16, 16), dtype=jnp.float32,
                            minval=0.0, maxval=10.0)
    o1 = feature_sg(x1)
    jax.block_until_ready(o1)
    assert o1.shape == x1.shape and o1.dtype == x1.dtype
    assert jnp.allclose(o1, ref_fn(x1), atol=1e-5), "fused path mismatch"

    # 2) Forced streaming path with a ragged last row-block (tests masking).
    x2 = jax.random.uniform(k2, (2, 14, 128), dtype=jnp.float32,
                            minval=-3.0, maxval=7.0)
    o2 = feature_sg(x2, block_rows=8, fused_rows_limit=0)
    jax.block_until_ready(o2)
    assert jnp.allclose(o2, ref_fn(x2), atol=1e-5), "streaming path mismatch"

    # 3) Lane-ragged total (not a multiple of 128) -> fused path with tiny pad.
    x3 = jax.random.uniform(k3, (5, 77), dtype=jnp.float32,
                            minval=0.0, maxval=1.0)
    o3 = feature_sg(x3)
    jax.block_until_ready(o3)
    assert jnp.allclose(o3, ref_fn(x3), atol=1e-5), "lane-pad path mismatch"

    # 4) Streaming + lane-ragged + rows not a multiple of the block.
    x4 = jax.random.uniform(k4, (1320,), dtype=jnp.float32,
                            minval=0.0, maxval=5.0)
    o4 = feature_sg(x4, block_rows=8, fused_rows_limit=0)
    jax.block_until_ready(o4)
    assert jnp.allclose(o4, ref_fn(x4), atol=1e-5), "ragged streaming mismatch"

    print("KERNEL_OK")
</pallas_src>

<mosaic_0001>
module attributes {stable_mosaic.version = 11 : i64} {
  func.func @_fused_kernel(%arg0: memref<16x128xf32, #tpu.memory_space<vmem>>, %arg1: memref<16x128xf32, #tpu.memory_space<vmem>>) attributes {dimension_semantics = [], scalar_prefetch = 0 : i64, scratch_operands = 0 : i64, tpu.core_type = #tpu.core_type<tc>} {
    %c0 = arith.constant 0 : index
    %c0_0 = arith.constant 0 : index
    %0 = vector.load %arg0[%c0, %c0_0] : memref<16x128xf32, #tpu.memory_space<vmem>>, vector<16x128xf32>
    %1 = vector.shape_cast %0 : vector<16x128xf32> to vector<1x16x128xf32>
    %cst = arith.constant dense<0xFF800000> : vector<1xf32>
    %2 = vector.multi_reduction <maximumf>, %1, %cst [1, 2] : vector<1x16x128xf32> to vector<1xf32>
    %3 = vector.shape_cast %2 : vector<1xf32> to vector<1x1x1xf32>
    %4 = vector.extract %3[0, 0, 0] : f32 from vector<1x1x1xf32>
    %5 = vector.broadcast %4 : f32 to vector<16x128xf32>
    %6 = arith.divf %0, %5 : vector<16x128xf32>
    %7 = arith.mulf %6, %6 : vector<16x128xf32>
    %cst_1 = arith.constant 2.550000e+02 : f32
    %8 = vector.broadcast %cst_1 : f32 to vector<16x128xf32>
    %9 = arith.mulf %7, %8 : vector<16x128xf32>
    %10 = math.roundeven %9 : vector<16x128xf32>
    %c0_2 = arith.constant 0 : index
    %c0_3 = arith.constant 0 : index
    %11 = vector.load %arg1[%c0_2, %c0_3] : memref<16x128xf32, #tpu.memory_space<vmem>>, vector<16x128xf32>
    tpu.vector_store %arg1[%c0_2, %c0_3], %10 {strides = array<i32>} : memref<16x128xf32, #tpu.memory_space<vmem>>, vector<16x128xf32>,
    return
  }
}

</mosaic_0001>

<llo_original>
// kernel: feature_sg.1
$region0: #{feature_sg.1}
  #allocation0 [shape = 'u32[]', space=smem, size = 0x4, offset = 0x4, fixed_abs, tag = 'smem constant byte address 0x4 - core index']
  #allocation1 [shape = 'u32[144,128]{1,0:T(1,128)}', space=vmem, size = 0x12000, scoped, tag = 'internal scratch']
  %s0 = inlined_call_operand.vmem [shape: f32[16,128], index: 0, kind: input, shape index: {}]
  %s1 = inlined_call_operand.vmem [shape: f32[16,128], index: 1, kind: output, shape index: {}]
  %s2 = sld [smem:[#allocation0]]
  $region14: #{feature_sg.1} parent=0
    _
  %s4 = ssub.s32 1, %s2
  %s5 = scalar_select 0, %s4, %s2
  // Predicated region
  $region2: #{feature_sg.1} parent=0 // pred_check
    _
  $region3: #{feature_sg.1} parent=0 // pred_check_branch
    %7 = sbr.rel (0) target = $region5
  $region4: #{feature_sg.1} parent=0 // pred_region
    _
  $region5: #{feature_sg.1} parent=0 // pred_fallthru
    _
  %v8 = vld [vmem:[%s0] sm:$0xff]
  %v9 = vld [vmem:[%s0 + $0x8] sm:$0xff]
  %v10 = vmax.f32 %v8, %v9
  %11 = vmax.xlane.f32.xlu0 %v10
  %v12 = vpop.xlane.xlu0 %11
  %v13 = vrot.slane %v12, 4
  %v14 = vmax.f32 %v12, %v13
  %v15 = vrot.slane %v14, 2
  %v16 = vmax.f32 %v14, %v15
  %v17 = vrot.slane %v16, 1
  %v18 = vmax.f32 %v16, %v17
  %s19 = vtos %v18
  %v20 = vstv %s19
  %v21 = vrcp.pop %v20
  %v22 = vmul.f32 %v8, %v21
  %v23 = vmul.f32 %v9, %v21
  %v24 = vmul.f32 %v22, %v22
  %v25 = vmul.f32 %v23, %v23
  %v26 = vmul.f32 %v24, 255.0
  %v27 = vmul.f32 %v25, 255.0
  %v28 = vround.ne.pseudo %v26
  %v29 = vround.ne.pseudo %v27
  %30 = vst [vmem:[%s1] sm:$0xff] %v28
  %31 = vst [vmem:[%s1 + $0x8] sm:$0xff] %v29
  // Predicated region
  $region6: #{feature_sg.1} parent=0 // pred_check
    _
  $region7: #{feature_sg.1} parent=0 // pred_check_branch
    %33 = sbr.rel (0) target = $region9
  $region8: #{feature_sg.1} parent=0 // pred_region
    _
  $region9: #{feature_sg.1} parent=0 // pred_fallthru
    _
  // Predicated region
  $region10: #{feature_sg.1} parent=0 // pred_check
    _
  $region11: #{feature_sg.1} parent=0 // pred_check_branch
    %35 = sbr.rel (0) target = $region13
  $region12: #{feature_sg.1} parent=0 // pred_region
    _
  $region13: #{feature_sg.1} parent=0 // pred_fallthru
    _

</llo_original>
